<compile_context>
chip_gen: v6e
topology: v6e:2x2x1
jax: 0.10.0
libtpu: 0.0.40
codegen_flags: <defaults>
</compile_context>

<pallas_src>
import math

import jax
import jax.numpy as jnp
from jax import lax
from jax.experimental import pallas as pl
from jax.experimental.pallas import tpu as pltpu


def _embed_gather_kernel(idx_ref, table_ref, out_ref):
    """Vectorized gather: out[n, :] = table[idx[n], :] via one-hot matmul.

    idx_ref   : VMEM (TN, 1)  int32   -- one tile of flattened indices
    table_ref : VMEM (R,  F)  float32 -- full (row-padded) embedding table
    out_ref   : VMEM (TN, F)  float32 -- output tile
    """
    tn = out_ref.shape[0]
    rows = table_ref.shape[0]
    # One-hot built on the VPU; the contraction runs on the MXU, giving a
    # fully vectorized gather and one unmasked, lane-dense (TN, F) store.
    row_ids = lax.broadcasted_iota(jnp.int32, (tn, rows), 1)
    one_hot = (row_ids == idx_ref[...]).astype(jnp.float32)
    out_ref[...] = jnp.dot(one_hot, table_ref[...],
                           preferred_element_type=jnp.float32)


def position_embedding_1d(x, embed_w, *, tn=256):
    """Pallas equivalent of PositionEmbeddingAbsoluteLearned_1D.forward.

    x       : integer index array of arbitrary shape (...,)
    embed_w : (max_num_positions, num_pos_feats) float32 embedding table
    returns : x.shape + (num_pos_feats,) float32
    """
    max_pos, feats = embed_w.shape

    lead_shape = x.shape
    total = int(math.prod(lead_shape)) if lead_shape else 1
    x_flat = jnp.reshape(x, (total,)).astype(jnp.int32)

    # Pad flattened index count up to a multiple of the tile size.
    padded = pl.cdiv(total, tn) * tn
    if padded != total:
        x_flat = jnp.concatenate(
            [x_flat, jnp.zeros((padded - total,), jnp.int32)])
    idx2d = x_flat.reshape(padded, 1)  # (TN, 1) blocks -> VMEM tiles

    # Pad the table's row count once on the host to a sublane multiple so the
    # MXU contraction dim needs no per-tile masking. Padded rows are zeros, so
    # out-of-range indices produce zero rows rather than garbage.
    rows_p = max(8, ((max_pos + 7) // 8) * 8)
    table = embed_w.astype(jnp.float32)
    if rows_p != max_pos:
        table = jnp.concatenate(
            [table, jnp.zeros((rows_p - max_pos, feats), jnp.float32)], axis=0)

    grid = (padded // tn,)

    out_flat = pl.pallas_call(
        _embed_gather_kernel,
        out_shape=jax.ShapeDtypeStruct((padded, feats), jnp.float32),
        grid_spec=pltpu.PrefetchScalarGridSpec(
            num_scalar_prefetch=0,
            grid=grid,
            in_specs=[
                # One (TN, 1) tile of indices per grid step.
                pl.BlockSpec((tn, 1), lambda p: (p, 0)),
                # Full embedding table resident in VMEM (block == full array).
                pl.BlockSpec((rows_p, feats), lambda p: (0, 0)),
            ],
            out_specs=pl.BlockSpec((tn, feats), lambda p: (p, 0)),
        ),
        compiler_params=pltpu.CompilerParams(
            # Tiles are independent -> parallel grid axis (2x on v7x megacore).
            dimension_semantics=("parallel",)),
    )(idx2d, table)

    return out_flat[:total].reshape(lead_shape + (feats,))


if __name__ == "__main__":
    # Module hyperparameters (defaults from __init__).
    max_num_positions = 50
    num_pos_feats = 256

    key = jax.random.PRNGKey(0)
    k_w, k_x = jax.random.split(key)

    # nn.init.uniform_ -> U[0, 1)
    x_embed_w = jax.random.uniform(
        k_w, (max_num_positions, num_pos_feats), dtype=jnp.float32)

    # Small index input: batch=2, seq=8 positions.
    B, N = 2, 8
    x_idx = jax.random.randint(
        k_x, (B, N), 0, max_num_positions, dtype=jnp.int32)

    pos = position_embedding_1d(x_idx, x_embed_w)
    pos = jax.block_until_ready(pos)

    # Pure-JAX reference for correctness (embedding lookup).
    ref = x_embed_w[x_idx]
    assert pos.shape == (B, N, num_pos_feats)
    assert pos.dtype == jnp.float32
    assert jnp.allclose(pos, ref), "mismatch vs reference embedding gather"

    print("KERNEL_OK")
</pallas_src>

<mosaic_0001>
module attributes {stable_mosaic.version = 11 : i64} {
  func.func @_embed_gather_kernel(%arg0: i32, %arg1: memref<256x1xi32, #tpu.memory_space<vmem>>, %arg2: memref<56x256xf32, #tpu.memory_space<vmem>>, %arg3: memref<256x256xf32, #tpu.memory_space<vmem>>) attributes {dimension_semantics = [#tpu.dimension_semantics<parallel>], iteration_bounds = array<i64: 1>, scalar_prefetch = 0 : i64, scratch_operands = 0 : i64, tpu.core_type = #tpu.core_type<tc>, window_params = [{transform_indices = @transform_0, window_bounds = array<i64: 256, 1>}, {pipeline_mode = #tpu.pipeline_mode<synchronous>, transform_indices = @transform_1, window_bounds = array<i64: 56, 256>}, {transform_indices = @transform_2, window_bounds = array<i64: 256, 256>}]} {
    %0 = tpu.iota {dimensions = array<i32: 1>} : vector<256x56xi32>
    %c0 = arith.constant 0 : index
    %c0_0 = arith.constant 0 : index
    %1 = vector.load %arg1[%c0, %c0_0] : memref<256x1xi32, #tpu.memory_space<vmem>>, vector<256x1xi32>
    %2 = vector.broadcast %1 : vector<256x1xi32> to vector<256x56xi32>
    %3 = arith.cmpi eq, %0, %2 : vector<256x56xi32>
    %4 = arith.extui %3 : vector<256x56xi1> to vector<256x56xi32>
    %5 = arith.sitofp %4 : vector<256x56xi32> to vector<256x56xf32>
    %c0_1 = arith.constant 0 : index
    %c0_2 = arith.constant 0 : index
    %6 = vector.load %arg2[%c0_1, %c0_2] : memref<56x256xf32, #tpu.memory_space<vmem>>, vector<56x256xf32>
    %cst = arith.constant dense<0.000000e+00> : vector<256x256xf32>
    %7 = tpu.matmul %5, %6, %cst {dimension_numbers = #tpu.dot_dimension_numbers<[1], [0], [0], [1], [0, 0, 1, 1], [], []>} : vector<256x56xf32>, vector<56x256xf32>, vector<256x256xf32> -> vector<256x256xf32>
    %c0_3 = arith.constant 0 : index
    %c0_4 = arith.constant 0 : index
    %8 = vector.load %arg3[%c0_3, %c0_4] : memref<256x256xf32, #tpu.memory_space<vmem>>, vector<256x256xf32>
    tpu.vector_store %arg3[%c0_3, %c0_4], %7 {strides = array<i32>} : memref<256x256xf32, #tpu.memory_space<vmem>>, vector<256x256xf32>,
    return
  }
  func.func @transform_0(%arg0: i32) -> (i32, i32) {
    %c0_i32 = arith.constant 0 : i32
    %c0_i32_0 = arith.constant 0 : i32
    return %arg0, %c0_i32 : i32, i32
  }
  func.func @transform_1(%arg0: i32) -> (i32, i32) {
    %c0_i32 = arith.constant 0 : i32
    %c0_i32_0 = arith.constant 0 : i32
    %c0_i32_1 = arith.constant 0 : i32
    return %c0_i32, %c0_i32_0 : i32, i32
  }
  func.func @transform_2(%arg0: i32) -> (i32, i32) {
    %c0_i32 = arith.constant 0 : i32
    %c0_i32_0 = arith.constant 0 : i32
    return %arg0, %c0_i32 : i32, i32
  }
}

</mosaic_0001>

<llo_original>
// kernel: tpu_custom_call.1
$region0: #{tpu_custom_call.1}
  #allocation0 [shape = 'u32[]', space=smem, size = 0x4, offset = 0x4, fixed_abs, tag = 'smem constant byte address 0x4 - core index']
  #allocation1 [shape = 'u32[144,128]{1,0:T(1,128)}', space=vmem, size = 0x12000, scoped, tag = 'internal scratch']
  %s0 = inlined_call_operand.vmem [shape: s32[256,1], index: 0, kind: input, shape index: {}]
  %s1 = inlined_call_operand.vmem [shape: f32[56,256], index: 1, kind: input, shape index: {}]
  %s2 = inlined_call_operand.hbm [shape: f32[256,256], index: 2, kind: output, shape index: {}]
  %s3 = sld [smem:[#allocation0]]
  $region18: #{tpu_custom_call.1} parent=0
    _
  %s5 = ssub.s32 1, %s3
  %s6 = scalar_select 0, %s5, %s3
  $region1: #{tpu_custom_call.1} parent=0
    #allocation2 [shape = 'u8[262144]{0}', space=vmem, size = 0x40000, scoped, tag = 'output window, operand 0, single buffered']
    #allocation3 [shape = 's32[1]{0}', space=sflag, size = 0x4, scoped, tag = 'scoped memory for tpu_custom_call.1']
    %7 = vsyncpa [#allocation3], 0
    // Predicated region
    $region2: #{tpu_custom_call.1} parent=1 // pred_check
      _
    $region3: #{tpu_custom_call.1} parent=1 // pred_check_branch
      %9 = sbr.rel (0) target = $region5
    $region4: #{tpu_custom_call.1} parent=1 // pred_region
      _
    $region5: #{tpu_custom_call.1} parent=1 // pred_fallthru
      _
    // Predicated region
    $region6: #{tpu_custom_call.1} parent=1 // pred_check
      _
    $region7: #{tpu_custom_call.1} parent=1 // pred_check_branch
      %11 = sbr.rel (0) target = $region9
    $region8: #{tpu_custom_call.1} parent=1 // pred_region
      _
    $region9: #{tpu_custom_call.1} parent=1 // pred_fallthru
      _
    %v12 = vlaneseq
    %v13 = vand.u32 %v12, 127
    %v14 = vld [vmem:[%s0] sm:$0xff]
    %v15 = vld [vmem:[%s0 + $0x8] sm:$0xff]
    %v16 = vld [vmem:[%s0 + $0x10] sm:$0xff]
    %v17 = vld [vmem:[%s0 + $0x18] sm:$0xff]
    %v18 = vld [vmem:[%s0 + $0x20] sm:$0xff]
    %v19 = vld [vmem:[%s0 + $0x28] sm:$0xff]
    %v20 = vld [vmem:[%s0 + $0x30] sm:$0xff]
    %v21 = vld [vmem:[%s0 + $0x38] sm:$0xff]
    %v22 = vld [vmem:[%s0 + $0x40] sm:$0xff]
    %v23 = vld [vmem:[%s0 + $0x48] sm:$0xff]
    %v24 = vld [vmem:[%s0 + $0x50] sm:$0xff]
    %v25 = vld [vmem:[%s0 + $0x58] sm:$0xff]
    %v26 = vld [vmem:[%s0 + $0x60] sm:$0xff]
    %v27 = vld [vmem:[%s0 + $0x68] sm:$0xff]
    %v28 = vld [vmem:[%s0 + $0x70] sm:$0xff]
    %v29 = vld [vmem:[%s0 + $0x78] sm:$0xff]
    %v30 = vld [vmem:[%s0 + $0x80] sm:$0xff]
    %v31 = vld [vmem:[%s0 + $0x88] sm:$0xff]
    %v32 = vld [vmem:[%s0 + $0x90] sm:$0xff]
    %v33 = vld [vmem:[%s0 + $0x98] sm:$0xff]
    %v34 = vld [vmem:[%s0 + $0xa0] sm:$0xff]
    %v35 = vld [vmem:[%s0 + $0xa8] sm:$0xff]
    %v36 = vld [vmem:[%s0 + $0xb0] sm:$0xff]
    %v37 = vld [vmem:[%s0 + $0xb8] sm:$0xff]
    %v38 = vld [vmem:[%s0 + $0xc0] sm:$0xff]
    %v39 = vld [vmem:[%s0 + $0xc8] sm:$0xff]
    %v40 = vld [vmem:[%s0 + $0xd0] sm:$0xff]
    %v41 = vld [vmem:[%s0 + $0xd8] sm:$0xff]
    %v42 = vld [vmem:[%s0 + $0xe0] sm:$0xff]
    %v43 = vld [vmem:[%s0 + $0xe8] sm:$0xff]
    %v44 = vld [vmem:[%s0 + $0xf0] sm:$0xff]
    %v45 = vld [vmem:[%s0 + $0xf8] sm:$0xff]
    %46 = vset.pattern.permute.xlu0 0
    %47 = vperm.xlu0 %46, %v14
    %v48 = vpop.permute.xlu0 %47
    %49 = vset.pattern.permute.xlu0 0
    %50 = vperm.xlu0 %49, %v15
    %v51 = vpop.permute.xlu0 %50
    %52 = vset.pattern.permute.xlu0 0
    %53 = vperm.xlu0 %52, %v16
    %v54 = vpop.permute.xlu0 %53
    %55 = vset.pattern.permute.xlu0 0
    %56 = vperm.xlu0 %55, %v17
    %v57 = vpop.permute.xlu0 %56
    %58 = vset.pattern.permute.xlu0 0
    %59 = vperm.xlu0 %58, %v18
    %v60 = vpop.permute.xlu0 %59
    %61 = vset.pattern.permute.xlu0 0
    %62 = vperm.xlu0 %61, %v19
    %v63 = vpop.permute.xlu0 %62
    %64 = vset.pattern.permute.xlu0 0
    %65 = vperm.xlu0 %64, %v20
    %v66 = vpop.permute.xlu0 %65
    %67 = vset.pattern.permute.xlu0 0
    %68 = vperm.xlu0 %67, %v21
    %v69 = vpop.permute.xlu0 %68
    %70 = vset.pattern.permute.xlu0 0
    %71 = vperm.xlu0 %70, %v22
    %v72 = vpop.permute.xlu0 %71
    %73 = vset.pattern.permute.xlu0 0
    %74 = vperm.xlu0 %73, %v23
    %v75 = vpop.permute.xlu0 %74
    %76 = vset.pattern.permute.xlu0 0
    %77 = vperm.xlu0 %76, %v24
    %v78 = vpop.permute.xlu0 %77
    %79 = vset.pattern.permute.xlu0 0
    %80 = vperm.xlu0 %79, %v25
    %v81 = vpop.permute.xlu0 %80
    %82 = vset.pattern.permute.xlu0 0
    %83 = vperm.xlu0 %82, %v26
    %v84 = vpop.permute.xlu0 %83
    %85 = vset.pattern.permute.xlu0 0
    %86 = vperm.xlu0 %85, %v27
    %v87 = vpop.permute.xlu0 %86
    %88 = vset.pattern.permute.xlu0 0
    %89 = vperm.xlu0 %88, %v28
    %v90 = vpop.permute.xlu0 %89
    %91 = vset.pattern.permute.xlu0 0
    %92 = vperm.xlu0 %91, %v29
    %v93 = vpop.permute.xlu0 %92
    %94 = vset.pattern.permute.xlu0 0
    %95 = vperm.xlu0 %94, %v30
    %v96 = vpop.permute.xlu0 %95
    %97 = vset.pattern.permute.xlu0 0
    %98 = vperm.xlu0 %97, %v31
    %v99 = vpop.permute.xlu0 %98
    %100 = vset.pattern.permute.xlu0 0
    %101 = vperm.xlu0 %100, %v32
    %v102 = vpop.permute.xlu0 %101
    %103 = vset.pattern.permute.xlu0 0
    %104 = vperm.xlu0 %103, %v33
    %v105 = vpop.permute.xlu0 %104
    %106 = vset.pattern.permute.xlu0 0
    %107 = vperm.xlu0 %106, %v34
    %v108 = vpop.permute.xlu0 %107
    %109 = vset.pattern.permute.xlu0 0
    %110 = vperm.xlu0 %109, %v35
    %v111 = vpop.permute.xlu0 %110
    %112 = vset.pattern.permute.xlu0 0
    %113 = vperm.xlu0 %112, %v36
    %v114 = vpop.permute.xlu0 %113
    %115 = vset.pattern.permute.xlu0 0
    %116 = vperm.xlu0 %115, %v37
    %v117 = vpop.permute.xlu0 %116
    %118 = vset.pattern.permute.xlu0 0
    %119 = vperm.xlu0 %118, %v38
    %v120 = vpop.permute.xlu0 %119
    %121 = vset.pattern.permute.xlu0 0
    %122 = vperm.xlu0 %121, %v39
    %v123 = vpop.permute.xlu0 %122
    %124 = vset.pattern.permute.xlu0 0
    %125 = vperm.xlu0 %124, %v40
    %v126 = vpop.permute.xlu0 %125
    %127 = vset.pattern.permute.xlu0 0
    %128 = vperm.xlu0 %127, %v41
    %v129 = vpop.permute.xlu0 %128
    %130 = vset.pattern.permute.xlu0 0
    %131 = vperm.xlu0 %130, %v42
    %v132 = vpop.permute.xlu0 %131
    %133 = vset.pattern.permute.xlu0 0
    %134 = vperm.xlu0 %133, %v43
    %v135 = vpop.permute.xlu0 %134
    %136 = vset.pattern.permute.xlu0 0
    %137 = vperm.xlu0 %136, %v44
    %v138 = vpop.permute.xlu0 %137
    %139 = vset.pattern.permute.xlu0 0
    %140 = vperm.xlu0 %139, %v45
    %v141 = vpop.permute.xlu0 %140
    %vm142 = vcmp.eq.s32.totalorder %v13, %v48
    %vm143 = vcmp.eq.s32.totalorder %v13, %v51
    %vm144 = vcmp.eq.s32.totalorder %v13, %v54
    %vm145 = vcmp.eq.s32.totalorder %v13, %v57
    %vm146 = vcmp.eq.s32.totalorder %v13, %v60
    %vm147 = vcmp.eq.s32.totalorder %v13, %v63
    %vm148 = vcmp.eq.s32.totalorder %v13, %v66
    %vm149 = vcmp.eq.s32.totalorder %v13, %v69
    %vm150 = vcmp.eq.s32.totalorder %v13, %v72
    %vm151 = vcmp.eq.s32.totalorder %v13, %v75
    %vm152 = vcmp.eq.s32.totalorder %v13, %v78
    %vm153 = vcmp.eq.s32.totalorder %v13, %v81
    %vm154 = vcmp.eq.s32.totalorder %v13, %v84
    %vm155 = vcmp.eq.s32.totalorder %v13, %v87
    %vm156 = vcmp.eq.s32.totalorder %v13, %v90
    %vm157 = vcmp.eq.s32.totalorder %v13, %v93
    %vm158 = vcmp.eq.s32.totalorder %v13, %v96
    %vm159 = vcmp.eq.s32.totalorder %v13, %v99
    %vm160 = vcmp.eq.s32.totalorder %v13, %v102
    %vm161 = vcmp.eq.s32.totalorder %v13, %v105
    %vm162 = vcmp.eq.s32.totalorder %v13, %v108
    %vm163 = vcmp.eq.s32.totalorder %v13, %v111
    %vm164 = vcmp.eq.s32.totalorder %v13, %v114
    %vm165 = vcmp.eq.s32.totalorder %v13, %v117
    %vm166 = vcmp.eq.s32.totalorder %v13, %v120
    %vm167 = vcmp.eq.s32.totalorder %v13, %v123
    %vm168 = vcmp.eq.s32.totalorder %v13, %v126
    %vm169 = vcmp.eq.s32.totalorder %v13, %v129
    %vm170 = vcmp.eq.s32.totalorder %v13, %v132
    %vm171 = vcmp.eq.s32.totalorder %v13, %v135
    %vm172 = vcmp.eq.s32.totalorder %v13, %v138
    %vm173 = vcmp.eq.s32.totalorder %v13, %v141
    %v174 = vsel %vm142, 1, 0
    %v175 = vsel %vm143, 1, 0
    %v176 = vsel %vm144, 1, 0
    %v177 = vsel %vm145, 1, 0
    %v178 = vsel %vm146, 1, 0
    %v179 = vsel %vm147, 1, 0
    %v180 = vsel %vm148, 1, 0
    %v181 = vsel %vm149, 1, 0
    %v182 = vsel %vm150, 1, 0
    %v183 = vsel %vm151, 1, 0
    %v184 = vsel %vm152, 1, 0
    %v185 = vsel %vm153, 1, 0
    %v186 = vsel %vm154, 1, 0
    %v187 = vsel %vm155, 1, 0
    %v188 = vsel %vm156, 1, 0
    %v189 = vsel %vm157, 1, 0
    %v190 = vsel %vm158, 1, 0
    %v191 = vsel %vm159, 1, 0
    %v192 = vsel %vm160, 1, 0
    %v193 = vsel %vm161, 1, 0
    %v194 = vsel %vm162, 1, 0
    %v195 = vsel %vm163, 1, 0
    %v196 = vsel %vm164, 1, 0
    %v197 = vsel %vm165, 1, 0
    %v198 = vsel %vm166, 1, 0
    %v199 = vsel %vm167, 1, 0
    %v200 = vsel %vm168, 1, 0
    %v201 = vsel %vm169, 1, 0
    %v202 = vsel %vm170, 1, 0
    %v203 = vsel %vm171, 1, 0
    %v204 = vsel %vm172, 1, 0
    %v205 = vsel %vm173, 1, 0
    %v206 = vcvt.s32.f32 %v174
    %v207 = vcvt.s32.f32 %v175
    %v208 = vcvt.s32.f32 %v176
    %v209 = vcvt.s32.f32 %v177
    %v210 = vcvt.s32.f32 %v178
    %v211 = vcvt.s32.f32 %v179
    %v212 = vcvt.s32.f32 %v180
    %v213 = vcvt.s32.f32 %v181
    %v214 = vcvt.s32.f32 %v182
    %v215 = vcvt.s32.f32 %v183
    %v216 = vcvt.s32.f32 %v184
    %v217 = vcvt.s32.f32 %v185
    %v218 = vcvt.s32.f32 %v186
    %v219 = vcvt.s32.f32 %v187
    %v220 = vcvt.s32.f32 %v188
    %v221 = vcvt.s32.f32 %v189
    %v222 = vcvt.s32.f32 %v190
    %v223 = vcvt.s32.f32 %v191
    %v224 = vcvt.s32.f32 %v192
    %v225 = vcvt.s32.f32 %v193
    %v226 = vcvt.s32.f32 %v194
    %v227 = vcvt.s32.f32 %v195
    %v228 = vcvt.s32.f32 %v196
    %v229 = vcvt.s32.f32 %v197
    %v230 = vcvt.s32.f32 %v198
    %v231 = vcvt.s32.f32 %v199
    %v232 = vcvt.s32.f32 %v200
    %v233 = vcvt.s32.f32 %v201
    %v234 = vcvt.s32.f32 %v202
    %v235 = vcvt.s32.f32 %v203
    %v236 = vcvt.s32.f32 %v204
    %v237 = vcvt.s32.f32 %v205
    %v238 = vld [vmem:[%s1] sm:$0xff]
    %v239 = vld [vmem:[%s1 + $0x8] sm:$0xff]
    %v240 = vld [vmem:[%s1 + $0x10] sm:$0xff]
    %v241 = vld [vmem:[%s1 + $0x18] sm:$0xff]
    %v242 = vld [vmem:[%s1 + $0x20] sm:$0xff]
    %v243 = vld [vmem:[%s1 + $0x28] sm:$0xff]
    %v244 = vld [vmem:[%s1 + $0x30] sm:$0xff]
    %v245 = vld [vmem:[%s1 + $0x38] sm:$0xff]
    %v246 = vld [vmem:[%s1 + $0x40] sm:$0xff]
    %v247 = vld [vmem:[%s1 + $0x48] sm:$0xff]
    %v248 = vld [vmem:[%s1 + $0x50] sm:$0xff]
    %v249 = vld [vmem:[%s1 + $0x58] sm:$0xff]
    %v250 = vld [vmem:[%s1 + $0x60] sm:$0xff]
    %v251 = vld [vmem:[%s1 + $0x68] sm:$0xff]
    %vm252 = vcmask 457728
    %v254 = vsel %vm252, %v206, 0
    %v257 = vsel %vm252, %v207, 0
    %v260 = vsel %vm252, %v208, 0
    %v263 = vsel %vm252, %v209, 0
    %v266 = vsel %vm252, %v210, 0
    %v269 = vsel %vm252, %v211, 0
    %v272 = vsel %vm252, %v212, 0
    %v275 = vsel %vm252, %v213, 0
    %v278 = vsel %vm252, %v214, 0
    %v281 = vsel %vm252, %v215, 0
    %v284 = vsel %vm252, %v216, 0
    %v287 = vsel %vm252, %v217, 0
    %v290 = vsel %vm252, %v218, 0
    %v293 = vsel %vm252, %v219, 0
    %v296 = vsel %vm252, %v220, 0
    %v299 = vsel %vm252, %v221, 0
    %v302 = vsel %vm252, %v222, 0
    %v305 = vsel %vm252, %v223, 0
    %v308 = vsel %vm252, %v224, 0
    %v311 = vsel %vm252, %v225, 0
    %v314 = vsel %vm252, %v226, 0
    %v317 = vsel %vm252, %v227, 0
    %v320 = vsel %vm252, %v228, 0
    %v323 = vsel %vm252, %v229, 0
    %v326 = vsel %vm252, %v230, 0
    %v329 = vsel %vm252, %v231, 0
    %v332 = vsel %vm252, %v232, 0
    %v335 = vsel %vm252, %v233, 0
    %v338 = vsel %vm252, %v234, 0
    %v341 = vsel %vm252, %v235, 0
    %v344 = vsel %vm252, %v236, 0
    %v347 = vsel %vm252, %v237, 0
    %349 = vmatprep.subr.mxu0 0.0
    %350 = vmatpush1.msra.mxu0 0.0
    %351 = vmatprep.subr.mxu0 0.0
    %352 = vmatpush1.msra.mxu0 0.0
    %353 = vmatprep.subr.mxu0 0.0
    %354 = vmatpush1.msra.mxu0 0.0
    %355 = vmatprep.subr.mxu0 0.0
    %356 = vmatpush1.msra.mxu0 0.0
    %357 = vmatprep.subr.mxu0 0.0
    %358 = vmatpush1.msra.mxu0 0.0
    %359 = vmatprep.subr.mxu0 0.0
    %360 = vmatpush1.msra.mxu0 0.0
    %361 = vmatprep.subr.mxu0 0.0
    %362 = vmatpush1.msra.mxu0 0.0
    %363 = vmatprep.subr.mxu0 0.0
    %364 = vmatpush1.msra.mxu0 0.0
    %365 = vmatprep.subr.mxu0 0.0
    %366 = vmatpush1.msra.mxu0 0.0
    %367 = vmatprep.subr.mxu0 %v251
    %368 = vmatpush1.msra.mxu0 %v250
    %369 = vmatprep.subr.mxu0 %v249
    %370 = vmatpush1.msra.mxu0 %v248
    %371 = vmatprep.subr.mxu0 %v247
    %372 = vmatpush1.msra.mxu0 %v246
    %373 = vmatprep.subr.mxu0 %v245
    %374 = vmatpush1.msra.mxu0 %v244
    %375 = vmatprep.subr.mxu0 %v243
    %376 = vmatpush1.msra.mxu0 %v242
    %377 = vmatprep.subr.mxu0 %v241
    %378 = vmatpush1.msra.mxu0 %v240
    %379 = vmatprep.subr.mxu0 %v239
    %380 = vmatpush1.msra.mxu0 %v238
    %381 = vmatprep.subr.mxu0 0.0
    %382 = vmatpush2.msra.mxu0 0.0
    %383 = vmatprep.subr.mxu0 0.0
    %384 = vmatpush2.msra.mxu0 0.0
    %385 = vmatprep.subr.mxu0 0.0
    %386 = vmatpush2.msra.mxu0 0.0
    %387 = vmatprep.subr.mxu0 0.0
    %388 = vmatpush2.msra.mxu0 0.0
    %389 = vmatprep.subr.mxu0 0.0
    %390 = vmatpush2.msra.mxu0 0.0
    %391 = vmatprep.subr.mxu0 0.0
    %392 = vmatpush2.msra.mxu0 0.0
    %393 = vmatprep.subr.mxu0 0.0
    %394 = vmatpush2.msra.mxu0 0.0
    %395 = vmatprep.subr.mxu0 0.0
    %396 = vmatpush2.msra.mxu0 0.0
    %397 = vmatprep.subr.mxu0 0.0
    %398 = vmatpush2.msra.mxu0 0.0
    %399 = vmatprep.subr.mxu0 0.0
    %400 = vmatpush2.msra.mxu0 0.0
    %401 = vmatprep.subr.mxu0 0.0
    %402 = vmatpush2.msra.mxu0 0.0
    %403 = vmatprep.subr.mxu0 0.0
    %404 = vmatpush2.msra.mxu0 0.0
    %405 = vmatprep.subr.mxu0 0.0
    %406 = vmatpush2.msra.mxu0 0.0
    %407 = vmatprep.subr.mxu0 0.0
    %408 = vmatpush2.msra.mxu0 0.0
    %409 = vmatprep.subr.mxu0 0.0
    %410 = vmatpush2.msra.mxu0 0.0
    %411 = vmatprep.subr.mxu0 0.0
    %412 = vmatpush2.msra.mxu0 0.0
    %413 = vmatprep.mubr.f32.mxu0 0.0
    %414 = vmatmul.mubr.f32.gmra.mxu0 %v254
    %v415 = vpop.f32.mrf.mxu0
    %v416 = vadd.f32 0.0, %v415
    %v417 = vpop.f32.mrf.mxu0
    %v418 = vadd.f32 0.0, %v417
    %419 = vmatprep.mubr.f32.mxu0 0.0
    %420 = vmatmul.mubr.f32.gmra.mxu0 %v257
    %v421 = vpop.f32.mrf.mxu0
    %v422 = vadd.f32 0.0, %v421
    %v423 = vpop.f32.mrf.mxu0
    %v424 = vadd.f32 0.0, %v423
    %425 = vmatprep.mubr.f32.mxu0 0.0
    %426 = vmatmul.mubr.f32.gmra.mxu0 %v260
    %v427 = vpop.f32.mrf.mxu0
    %v428 = vadd.f32 0.0, %v427
    %v429 = vpop.f32.mrf.mxu0
    %v430 = vadd.f32 0.0, %v429
    %431 = vmatprep.mubr.f32.mxu0 0.0
    %432 = vmatmul.mubr.f32.gmra.mxu0 %v263
    %v433 = vpop.f32.mrf.mxu0
    %v434 = vadd.f32 0.0, %v433
    %v435 = vpop.f32.mrf.mxu0
    %v436 = vadd.f32 0.0, %v435
    %437 = vmatprep.mubr.f32.mxu0 0.0
    %438 = vmatmul.mubr.f32.gmra.mxu0 %v266
    %v439 = vpop.f32.mrf.mxu0
    %v440 = vadd.f32 0.0, %v439
    %v441 = vpop.f32.mrf.mxu0
    %v442 = vadd.f32 0.0, %v441
    %443 = vmatprep.mubr.f32.mxu0 0.0
    %444 = vmatmul.mubr.f32.gmra.mxu0 %v269
    %v445 = vpop.f32.mrf.mxu0
    %v446 = vadd.f32 0.0, %v445
    %v447 = vpop.f32.mrf.mxu0
    %v448 = vadd.f32 0.0, %v447
    %449 = vmatprep.mubr.f32.mxu0 0.0
    %450 = vmatmul.mubr.f32.gmra.mxu0 %v272
    %v451 = vpop.f32.mrf.mxu0
    %v452 = vadd.f32 0.0, %v451
    %v453 = vpop.f32.mrf.mxu0
    %v454 = vadd.f32 0.0, %v453
    %455 = vmatprep.mubr.f32.mxu0 0.0
    %456 = vmatmul.mubr.f32.gmra.mxu0 %v275
    %v457 = vpop.f32.mrf.mxu0
    %v458 = vadd.f32 0.0, %v457
    %v459 = vpop.f32.mrf.mxu0
    %v460 = vadd.f32 0.0, %v459
    %461 = vmatprep.mubr.f32.mxu0 0.0
    %462 = vmatmul.mubr.f32.gmra.mxu0 %v278
    %v463 = vpop.f32.mrf.mxu0
    %v464 = vadd.f32 0.0, %v463
    %v465 = vpop.f32.mrf.mxu0
    %v466 = vadd.f32 0.0, %v465
    %467 = vmatprep.mubr.f32.mxu0 0.0
    %468 = vmatmul.mubr.f32.gmra.mxu0 %v281
    %v469 = vpop.f32.mrf.mxu0
    %v470 = vadd.f32 0.0, %v469
    %v471 = vpop.f32.mrf.mxu0
    %v472 = vadd.f32 0.0, %v471
    %473 = vmatprep.mubr.f32.mxu0 0.0
    %474 = vmatmul.mubr.f32.gmra.mxu0 %v284
    %v475 = vpop.f32.mrf.mxu0
    %v476 = vadd.f32 0.0, %v475
    %v477 = vpop.f32.mrf.mxu0
    %v478 = vadd.f32 0.0, %v477
    %479 = vmatprep.mubr.f32.mxu0 0.0
    %480 = vmatmul.mubr.f32.gmra.mxu0 %v287
    %v481 = vpop.f32.mrf.mxu0
    %v482 = vadd.f32 0.0, %v481
    %v483 = vpop.f32.mrf.mxu0
    %v484 = vadd.f32 0.0, %v483
    %485 = vmatprep.mubr.f32.mxu0 0.0
    %486 = vmatmul.mubr.f32.gmra.mxu0 %v290
    %v487 = vpop.f32.mrf.mxu0
    %v488 = vadd.f32 0.0, %v487
    %v489 = vpop.f32.mrf.mxu0
    %v490 = vadd.f32 0.0, %v489
    %491 = vmatprep.mubr.f32.mxu0 0.0
    %492 = vmatmul.mubr.f32.gmra.mxu0 %v293
    %v493 = vpop.f32.mrf.mxu0
    %v494 = vadd.f32 0.0, %v493
    %v495 = vpop.f32.mrf.mxu0
    %v496 = vadd.f32 0.0, %v495
    %497 = vmatprep.mubr.f32.mxu0 0.0
    %498 = vmatmul.mubr.f32.gmra.mxu0 %v296
    %v499 = vpop.f32.mrf.mxu0
    %v500 = vadd.f32 0.0, %v499
    %v501 = vpop.f32.mrf.mxu0
    %v502 = vadd.f32 0.0, %v501
    %503 = vmatprep.mubr.f32.mxu0 0.0
    %504 = vmatmul.mubr.f32.gmra.mxu0 %v299
    %v505 = vpop.f32.mrf.mxu0
    %v506 = vadd.f32 0.0, %v505
    %v507 = vpop.f32.mrf.mxu0
    %v508 = vadd.f32 0.0, %v507
    %509 = vmatprep.mubr.f32.mxu0 0.0
    %510 = vmatmul.mubr.f32.gmra.mxu0 %v302
    %v511 = vpop.f32.mrf.mxu0
    %v512 = vadd.f32 0.0, %v511
    %v513 = vpop.f32.mrf.mxu0
    %v514 = vadd.f32 0.0, %v513
    %515 = vmatprep.mubr.f32.mxu0 0.0
    %516 = vmatmul.mubr.f32.gmra.mxu0 %v305
    %v517 = vpop.f32.mrf.mxu0
    %v518 = vadd.f32 0.0, %v517
    %v519 = vpop.f32.mrf.mxu0
    %v520 = vadd.f32 0.0, %v519
    %521 = vmatprep.mubr.f32.mxu0 0.0
    %522 = vmatmul.mubr.f32.gmra.mxu0 %v308
    %v523 = vpop.f32.mrf.mxu0
    %v524 = vadd.f32 0.0, %v523
    %v525 = vpop.f32.mrf.mxu0
    %v526 = vadd.f32 0.0, %v525
    %527 = vmatprep.mubr.f32.mxu0 0.0
    %528 = vmatmul.mubr.f32.gmra.mxu0 %v311
    %v529 = vpop.f32.mrf.mxu0
    %v530 = vadd.f32 0.0, %v529
    %v531 = vpop.f32.mrf.mxu0
    %v532 = vadd.f32 0.0, %v531
    %533 = vmatprep.mubr.f32.mxu0 0.0
    %534 = vmatmul.mubr.f32.gmra.mxu0 %v314
    %v535 = vpop.f32.mrf.mxu0
    %v536 = vadd.f32 0.0, %v535
    %v537 = vpop.f32.mrf.mxu0
    %v538 = vadd.f32 0.0, %v537
    %539 = vmatprep.mubr.f32.mxu0 0.0
    %540 = vmatmul.mubr.f32.gmra.mxu0 %v317
    %v541 = vpop.f32.mrf.mxu0
    %v542 = vadd.f32 0.0, %v541
    %v543 = vpop.f32.mrf.mxu0
    %v544 = vadd.f32 0.0, %v543
    %545 = vmatprep.mubr.f32.mxu0 0.0
    %546 = vmatmul.mubr.f32.gmra.mxu0 %v320
    %v547 = vpop.f32.mrf.mxu0
    %v548 = vadd.f32 0.0, %v547
    %v549 = vpop.f32.mrf.mxu0
    %v550 = vadd.f32 0.0, %v549
    %551 = vmatprep.mubr.f32.mxu0 0.0
    %552 = vmatmul.mubr.f32.gmra.mxu0 %v323
    %v553 = vpop.f32.mrf.mxu0
    %v554 = vadd.f32 0.0, %v553
    %v555 = vpop.f32.mrf.mxu0
    %v556 = vadd.f32 0.0, %v555
    %557 = vmatprep.mubr.f32.mxu0 0.0
    %558 = vmatmul.mubr.f32.gmra.mxu0 %v326
    %v559 = vpop.f32.mrf.mxu0
    %v560 = vadd.f32 0.0, %v559
    %v561 = vpop.f32.mrf.mxu0
    %v562 = vadd.f32 0.0, %v561
    %563 = vmatprep.mubr.f32.mxu0 0.0
    %564 = vmatmul.mubr.f32.gmra.mxu0 %v329
    %v565 = vpop.f32.mrf.mxu0
    %v566 = vadd.f32 0.0, %v565
    %v567 = vpop.f32.mrf.mxu0
    %v568 = vadd.f32 0.0, %v567
    %569 = vmatprep.mubr.f32.mxu0 0.0
    %570 = vmatmul.mubr.f32.gmra.mxu0 %v332
    %v571 = vpop.f32.mrf.mxu0
    %v572 = vadd.f32 0.0, %v571
    %v573 = vpop.f32.mrf.mxu0
    %v574 = vadd.f32 0.0, %v573
    %575 = vmatprep.mubr.f32.mxu0 0.0
    %576 = vmatmul.mubr.f32.gmra.mxu0 %v335
    %v577 = vpop.f32.mrf.mxu0
    %v578 = vadd.f32 0.0, %v577
    %v579 = vpop.f32.mrf.mxu0
    %v580 = vadd.f32 0.0, %v579
    %581 = vmatprep.mubr.f32.mxu0 0.0
    %582 = vmatmul.mubr.f32.gmra.mxu0 %v338
    %v583 = vpop.f32.mrf.mxu0
    %v584 = vadd.f32 0.0, %v583
    %v585 = vpop.f32.mrf.mxu0
    %v586 = vadd.f32 0.0, %v585
    %587 = vmatprep.mubr.f32.mxu0 0.0
    %588 = vmatmul.mubr.f32.gmra.mxu0 %v341
    %v589 = vpop.f32.mrf.mxu0
    %v590 = vadd.f32 0.0, %v589
    %v591 = vpop.f32.mrf.mxu0
    %v592 = vadd.f32 0.0, %v591
    %593 = vmatprep.mubr.f32.mxu0 0.0
    %594 = vmatmul.mubr.f32.gmra.mxu0 %v344
    %v595 = vpop.f32.mrf.mxu0
    %v596 = vadd.f32 0.0, %v595
    %v597 = vpop.f32.mrf.mxu0
    %v598 = vadd.f32 0.0, %v597
    %599 = vmatprep.mubr.f32.mxu0 0.0
    %600 = vmatmul.mubr.f32.gmra.mxu0 %v347
    %v601 = vpop.f32.mrf.mxu0
    %v602 = vadd.f32 0.0, %v601
    %v603 = vpop.f32.mrf.mxu0
    %v604 = vadd.f32 0.0, %v603
    %605 = vdwg.mxu0
    %606 = vst [vmem:[#allocation2] sm:$0xff] %v416
    %607 = vst [vmem:[#allocation2 + $0x8] sm:$0xff] %v418
    %608 = vst [vmem:[#allocation2 + $0x10] sm:$0xff] %v422
    %609 = vst [vmem:[#allocation2 + $0x18] sm:$0xff] %v424
    %610 = vst [vmem:[#allocation2 + $0x20] sm:$0xff] %v428
    %611 = vst [vmem:[#allocation2 + $0x28] sm:$0xff] %v430
    %612 = vst [vmem:[#allocation2 + $0x30] sm:$0xff] %v434
    %613 = vst [vmem:[#allocation2 + $0x38] sm:$0xff] %v436
    %614 = vst [vmem:[#allocation2 + $0x40] sm:$0xff] %v440
    %615 = vst [vmem:[#allocation2 + $0x48] sm:$0xff] %v442
    %616 = vst [vmem:[#allocation2 + $0x50] sm:$0xff] %v446
    %617 = vst [vmem:[#allocation2 + $0x58] sm:$0xff] %v448
    %618 = vst [vmem:[#allocation2 + $0x60] sm:$0xff] %v452
    %619 = vst [vmem:[#allocation2 + $0x68] sm:$0xff] %v454
    %620 = vst [vmem:[#allocation2 + $0x70] sm:$0xff] %v458
    %621 = vst [vmem:[#allocation2 + $0x78] sm:$0xff] %v460
    %622 = vst [vmem:[#allocation2 + $0x80] sm:$0xff] %v464
    %623 = vst [vmem:[#allocation2 + $0x88] sm:$0xff] %v466
    %624 = vst [vmem:[#allocation2 + $0x90] sm:$0xff] %v470
    %625 = vst [vmem:[#allocation2 + $0x98] sm:$0xff] %v472
    %626 = vst [vmem:[#allocation2 + $0xa0] sm:$0xff] %v476
    %627 = vst [vmem:[#allocation2 + $0xa8] sm:$0xff] %v478
    %628 = vst [vmem:[#allocation2 + $0xb0] sm:$0xff] %v482
    %629 = vst [vmem:[#allocation2 + $0xb8] sm:$0xff] %v484
    %630 = vst [vmem:[#allocation2 + $0xc0] sm:$0xff] %v488
    %631 = vst [vmem:[#allocation2 + $0xc8] sm:$0xff] %v490
    %632 = vst [vmem:[#allocation2 + $0xd0] sm:$0xff] %v494
    %633 = vst [vmem:[#allocation2 + $0xd8] sm:$0xff] %v496
    %634 = vst [vmem:[#allocation2 + $0xe0] sm:$0xff] %v500
    %635 = vst [vmem:[#allocation2 + $0xe8] sm:$0xff] %v502
    %636 = vst [vmem:[#allocation2 + $0xf0] sm:$0xff] %v506
    %637 = vst [vmem:[#allocation2 + $0xf8] sm:$0xff] %v508
    %638 = vst [vmem:[#allocation2 + $0x100] sm:$0xff] %v512
    %639 = vst [vmem:[#allocation2 + $0x108] sm:$0xff] %v514
    %640 = vst [vmem:[#allocation2 + $0x110] sm:$0xff] %v518
    %641 = vst [vmem:[#allocation2 + $0x118] sm:$0xff] %v520
    %642 = vst [vmem:[#allocation2 + $0x120] sm:$0xff] %v524
    %643 = vst [vmem:[#allocation2 + $0x128] sm:$0xff] %v526
    %644 = vst [vmem:[#allocation2 + $0x130] sm:$0xff] %v530
    %645 = vst [vmem:[#allocation2 + $0x138] sm:$0xff] %v532
    %646 = vst [vmem:[#allocation2 + $0x140] sm:$0xff] %v536
    %647 = vst [vmem:[#allocation2 + $0x148] sm:$0xff] %v538
    %648 = vst [vmem:[#allocation2 + $0x150] sm:$0xff] %v542
    %649 = vst [vmem:[#allocation2 + $0x158] sm:$0xff] %v544
    %650 = vst [vmem:[#allocation2 + $0x160] sm:$0xff] %v548
    %651 = vst [vmem:[#allocation2 + $0x168] sm:$0xff] %v550
    %652 = vst [vmem:[#allocation2 + $0x170] sm:$0xff] %v554
    %653 = vst [vmem:[#allocation2 + $0x178] sm:$0xff] %v556
    %654 = vst [vmem:[#allocation2 + $0x180] sm:$0xff] %v560
    %655 = vst [vmem:[#allocation2 + $0x188] sm:$0xff] %v562
    %656 = vst [vmem:[#allocation2 + $0x190] sm:$0xff] %v566
    %657 = vst [vmem:[#allocation2 + $0x198] sm:$0xff] %v568
    %658 = vst [vmem:[#allocation2 + $0x1a0] sm:$0xff] %v572
    %659 = vst [vmem:[#allocation2 + $0x1a8] sm:$0xff] %v574
    %660 = vst [vmem:[#allocation2 + $0x1b0] sm:$0xff] %v578
    %661 = vst [vmem:[#allocation2 + $0x1b8] sm:$0xff] %v580
    %662 = vst [vmem:[#allocation2 + $0x1c0] sm:$0xff] %v584
    %663 = vst [vmem:[#allocation2 + $0x1c8] sm:$0xff] %v586
    %664 = vst [vmem:[#allocation2 + $0x1d0] sm:$0xff] %v590
    %665 = vst [vmem:[#allocation2 + $0x1d8] sm:$0xff] %v592
    %666 = vst [vmem:[#allocation2 + $0x1e0] sm:$0xff] %v596
    %667 = vst [vmem:[#allocation2 + $0x1e8] sm:$0xff] %v598
    %668 = vst [vmem:[#allocation2 + $0x1f0] sm:$0xff] %v602
    %669 = vst [vmem:[#allocation2 + $0x1f8] sm:$0xff] %v604
    // Predicated region
    $region10: #{tpu_custom_call.1} parent=1 // pred_check
      _
    $region11: #{tpu_custom_call.1} parent=1 // pred_check_branch
      %671 = sbr.rel (0) target = $region13
    $region12: #{tpu_custom_call.1} parent=1 // pred_region
      %s673 = ssub.s32 8192, 8192
      %674 = vsyncadd [#allocation3], %s673
      %s675 = sshll.u32 [#allocation2], 4
      %s676 = int_to_ptr.vmem [resolvable:$true] %s675
      %681 = dma.vmem_to_hbm [thread:$0]  %s676, 8192, %s2, [#allocation3], 256, 256, 16
    $region13: #{tpu_custom_call.1} parent=1 // pred_fallthru
      _
    // Predicated region
    $region14: #{tpu_custom_call.1} parent=1 // pred_check
      _
    $region15: #{tpu_custom_call.1} parent=1 // pred_check_branch
      %683 = sbr.rel (0) target = $region17
    $region16: #{tpu_custom_call.1} parent=1 // pred_region
      %684 = dma.done [#allocation3], 8192
    $region17: #{tpu_custom_call.1} parent=1 // pred_fallthru
      _
    %685 = vsyncpa [#allocation3], 1

</llo_original>
